<compile_context>
chip_gen: v5e
topology: v5e:2x2
jax: 0.10.0
libtpu: 0.0.40
codegen_flags: <defaults>
</compile_context>

<pallas_src>
import jax
import jax.numpy as jnp
from jax.experimental import pallas as pl
from jax.experimental.pallas import tpu as pltpu

LANES = 128


def _tpu_generation() -> int:
    """Best-effort TPU generation (5/6/7/...); 0 if unknown."""
    try:
        kind = jax.devices()[0].device_kind.lower()
    except Exception:
        return 0
    for tok in ("v7", "v6", "v5", "v4", "v3", "v2"):
        if tok in kind:
            return int(tok[1])
    return 0


def _make_sigmoid_kernel(compute_dtype):
    def kernel(x_ref, o_ref):
        x = x_ref[...].astype(compute_dtype)
        # sigmoid(x) = 0.5 * (tanh(0.5 * x) + 1): one EUP op per element.
        y = 0.5 * (jnp.tanh(0.5 * x) + 1.0)
        o_ref[...] = y.astype(o_ref.dtype)
    return kernel


def pallas_sigmoid(x: jax.Array) -> jax.Array:
    """Elementwise sigmoid computed in a Pallas TPU kernel (any shape)."""
    orig_shape = x.shape
    orig_dtype = x.dtype
    gen = _tpu_generation()

    # Keep bf16/f32 end-to-end; any other dtype (f16/f64/int) routes through
    # f32 (two extra casts; integer inputs get truncated back — documented).
    if orig_dtype in (jnp.float32, jnp.bfloat16):
        io_dtype = orig_dtype
    else:
        io_dtype = jnp.float32

    # Native bf16 math on v6e/v7x (bf16 VPU/EUP); f32 math elsewhere.
    if io_dtype == jnp.bfloat16 and gen >= 6:
        compute_dtype = jnp.bfloat16
    else:
        compute_dtype = jnp.float32

    xf = x.reshape(-1)
    if xf.dtype != io_dtype:
        xf = xf.astype(io_dtype)
    n = xf.shape[0]

    itemsize = jnp.dtype(io_dtype).itemsize
    sub_mult = 8 if itemsize >= 4 else 16  # minimum sublane tile for the dtype

    # Pad only to a lane multiple (128); rows need not be 8/16-aligned because
    # the boundary block is masked as long as tile_rows stays aligned.
    if n % LANES != 0:
        n_pad = ((n + LANES - 1) // LANES) * LANES
        xf = jnp.pad(xf, (0, n_pad - n))
    else:
        n_pad = n
    rows = n_pad // LANES
    x2d = xf.reshape(rows, LANES)

    # Generation-tuned block size (bytes per operand per grid step).
    if gen >= 7:
        block_bytes = 8 * 1024 * 1024
        vmem_limit = 48 * 1024 * 1024   # 4x block = 32 MiB > 32 MiB default
    elif gen == 6:
        block_bytes = 4 * 1024 * 1024   # 4x block = 16 MiB fits 32 MiB default
        vmem_limit = None
    else:
        block_bytes = 2 * 1024 * 1024   # 4x block = 8 MiB fits 16 MiB default
        vmem_limit = None

    target_rows = max(
        sub_mult,
        (block_bytes // (LANES * itemsize)) // sub_mult * sub_mult,
    )
    tile_rows = rows if rows <= target_rows else target_rows

    # v7x has 2 TensorCores: make sure the parallel axis has >= 2 steps so the
    # grid actually shards across both cores for mid-size inputs.
    if gen >= 7 and rows > sub_mult:
        half = -(-rows // 2)
        half_aligned = -(-half // sub_mult) * sub_mult
        tile_rows = min(tile_rows, half_aligned)

    grid = (pl.cdiv(rows, tile_rows),)

    out2d = pl.pallas_call(
        _make_sigmoid_kernel(compute_dtype),
        out_shape=jax.ShapeDtypeStruct((rows, LANES), io_dtype),
        grid_spec=pltpu.PrefetchScalarGridSpec(
            num_scalar_prefetch=0,
            grid=grid,
            in_specs=[pl.BlockSpec((tile_rows, LANES), lambda i: (i, 0))],
            out_specs=pl.BlockSpec((tile_rows, LANES), lambda i: (i, 0)),
        ),
        compiler_params=pltpu.CompilerParams(
            dimension_semantics=("parallel",),
            vmem_limit_bytes=vmem_limit,
        ),
    )(x2d)

    out = out2d.reshape(-1)
    if n_pad != n:
        out = out[:n]
    out = out.reshape(orig_shape)
    if out.dtype != orig_dtype:
        out = out.astype(orig_dtype)
    return out


if __name__ == "__main__":
    key = jax.random.PRNGKey(0)

    # Small NCHW input consistent with the PyTorch module's forward.
    x = jax.random.normal(key, (2, 4, 16, 16), dtype=jnp.float32)
    y = jax.block_until_ready(pallas_sigmoid(x))
    y_ref = jax.nn.sigmoid(x)
    assert y.shape == x.shape and y.dtype == x.dtype
    assert jnp.max(jnp.abs(y - y_ref)) < 1e-5

    # bf16 path (bf16 I/O; native bf16 math on v6e/v7x, f32 math on v5e).
    xb = jax.random.normal(jax.random.PRNGKey(1), (2, 4, 16, 16),
                           dtype=jnp.bfloat16)
    yb = jax.block_until_ready(pallas_sigmoid(xb))
    yb_ref = jax.nn.sigmoid(xb.astype(jnp.float32)).astype(jnp.bfloat16)
    assert yb.shape == xb.shape and yb.dtype == xb.dtype
    assert jnp.max(jnp.abs(yb.astype(jnp.float32)
                           - yb_ref.astype(jnp.float32))) < 1e-2

    # Non-lane-aligned shape exercises the lane-only pad + slice-back path.
    xo = jax.random.normal(jax.random.PRNGKey(2), (3, 5, 7), dtype=jnp.float32)
    yo = jax.block_until_ready(pallas_sigmoid(xo))
    assert yo.shape == xo.shape and yo.dtype == xo.dtype
    assert jnp.max(jnp.abs(yo - jax.nn.sigmoid(xo))) < 1e-5

    print("KERNEL_OK")
</pallas_src>

<mosaic_0001>
module attributes {stable_mosaic.version = 11 : i64} {
  func.func @kernel(%arg0: i32, %arg1: memref<16x128xf32, #tpu.memory_space<vmem>>, %arg2: memref<16x128xf32, #tpu.memory_space<vmem>>) attributes {dimension_semantics = [#tpu.dimension_semantics<parallel>], iteration_bounds = array<i64: 1>, scalar_prefetch = 0 : i64, scratch_operands = 0 : i64, tpu.core_type = #tpu.core_type<tc>, window_params = [{transform_indices = @transform_0, window_bounds = array<i64: 16, 128>}, {transform_indices = @transform_1, window_bounds = array<i64: 16, 128>}]} {
    %c0 = arith.constant 0 : index
    %c0_0 = arith.constant 0 : index
    %0 = vector.load %arg1[%c0, %c0_0] : memref<16x128xf32, #tpu.memory_space<vmem>>, vector<16x128xf32>
    %cst = arith.constant 5.000000e-01 : f32
    %1 = vector.broadcast %cst : f32 to vector<16x128xf32>
    %2 = arith.mulf %1, %0 : vector<16x128xf32>
    %3 = math.tanh %2 : vector<16x128xf32>
    %cst_1 = arith.constant 1.000000e+00 : f32
    %4 = vector.broadcast %cst_1 : f32 to vector<16x128xf32>
    %5 = arith.addf %3, %4 : vector<16x128xf32>
    %cst_2 = arith.constant 5.000000e-01 : f32
    %6 = vector.broadcast %cst_2 : f32 to vector<16x128xf32>
    %7 = arith.mulf %6, %5 : vector<16x128xf32>
    %c0_3 = arith.constant 0 : index
    %c0_4 = arith.constant 0 : index
    %8 = vector.load %arg2[%c0_3, %c0_4] : memref<16x128xf32, #tpu.memory_space<vmem>>, vector<16x128xf32>
    tpu.vector_store %arg2[%c0_3, %c0_4], %7 {strides = array<i32>} : memref<16x128xf32, #tpu.memory_space<vmem>>, vector<16x128xf32>,
    return
  }
  func.func @transform_0(%arg0: i32) -> (i32, i32) {
    %c0_i32 = arith.constant 0 : i32
    %c0_i32_0 = arith.constant 0 : i32
    return %arg0, %c0_i32 : i32, i32
  }
  func.func @transform_1(%arg0: i32) -> (i32, i32) {
    %c0_i32 = arith.constant 0 : i32
    %c0_i32_0 = arith.constant 0 : i32
    return %arg0, %c0_i32 : i32, i32
  }
}

</mosaic_0001>

<llo_original>
// kernel: tpu_custom_call.1
$region0: #{tpu_custom_call.1}
  #allocation0 [shape = 'u32[]', space=smem, size = 0x4, offset = 0x4, fixed_abs, tag = 'smem constant byte address 0x4 - core index']
  #allocation1 [shape = 'u32[72,128]{1,0:T(1,128)}', space=vmem, size = 0x9000, scoped, tag = 'internal scratch']
  %s0 = inlined_call_operand.hbm [shape: f32[16,128], index: 0, kind: input, shape index: {}]
  %s1 = inlined_call_operand.hbm [shape: f32[16,128], index: 1, kind: output, shape index: {}]
  %s2 = sld [smem:[#allocation0]]
  $region18: #{tpu_custom_call.1} parent=0
    _
  %s4 = ssub.s32 1, %s2
  %s5 = scalar_select 0, %s4, %s2
  $region1: #{tpu_custom_call.1} parent=0
    #allocation2 [shape = 'u8[8192]{0}', space=vmem, size = 0x2000, scoped, tag = 'input window, operand 0, single buffered']
    #allocation3 [shape = 's32[1]{0}', space=sflag, size = 0x4, scoped, tag = 'scoped memory for tpu_custom_call.1']
    #allocation4 [shape = 's32[1]{0}', space=sflag, size = 0x4, scoped, tag = 'scoped memory for tpu_custom_call.1']
    #allocation5 [shape = 'u8[8192]{0}', space=vmem, size = 0x2000, scoped, tag = 'output window, operand 0, single buffered']
    %6 = vsyncpa [#allocation3], 0
    %7 = vsyncpa [#allocation4], 0
    // Predicated region
    $region2: #{tpu_custom_call.1} parent=1 // pred_check
      _
    $region3: #{tpu_custom_call.1} parent=1 // pred_check_branch
      %9 = sbr.rel (0) target = $region5
    $region4: #{tpu_custom_call.1} parent=1 // pred_region
      %11 = vsyncadd [#allocation3], 0
      %s12 = sshll.u32 %s0, 4
      %s13 = int_to_ptr.hbm [resolvable:$true] %s12
      %s14 = sshll.u32 [#allocation2], 4
      %s15 = int_to_ptr.vmem [resolvable:$true] %s14
      %20 = dma.hbm_to_vmem [thread:$0]  %s13, 256, %s15, [#allocation3], 128, 128, 8
    $region5: #{tpu_custom_call.1} parent=1 // pred_fallthru
      _
    // Predicated region
    $region6: #{tpu_custom_call.1} parent=1 // pred_check
      _
    $region7: #{tpu_custom_call.1} parent=1 // pred_check_branch
      %22 = sbr.rel (0) target = $region9
    $region8: #{tpu_custom_call.1} parent=1 // pred_region
      %24 = dma.done [#allocation3], 256
    $region9: #{tpu_custom_call.1} parent=1 // pred_fallthru
      _
    %v25 = vld [vmem:[#allocation2] sm:$0xff]
    %v26 = vld [vmem:[#allocation2 + $0x8] sm:$0xff]
    %v27 = vmul.f32 %v25, 0.5
    %v28 = vmul.f32 %v26, 0.5
    %v29 = vtanh.pop %v27
    %v30 = vtanh.pop %v28
    %v31 = vadd.f32 %v29, 1.0
    %v32 = vadd.f32 %v30, 1.0
    %v33 = vmul.f32 %v31, 0.5
    %v34 = vmul.f32 %v32, 0.5
    %35 = vst [vmem:[#allocation5] sm:$0xff] %v33
    %36 = vst [vmem:[#allocation5 + $0x8] sm:$0xff] %v34
    // Predicated region
    $region10: #{tpu_custom_call.1} parent=1 // pred_check
      _
    $region11: #{tpu_custom_call.1} parent=1 // pred_check_branch
      %38 = sbr.rel (0) target = $region13
    $region12: #{tpu_custom_call.1} parent=1 // pred_region
      %40 = vsyncadd [#allocation4], 0
      %s41 = sshll.u32 [#allocation5], 4
      %s42 = int_to_ptr.vmem [resolvable:$true] %s41
      %s43 = sshll.u32 %s1, 4
      %s44 = int_to_ptr.hbm [resolvable:$true] %s43
      %49 = dma.vmem_to_hbm [thread:$0]  %s42, 256, %s44, [#allocation4], 128, 128, 8
    $region13: #{tpu_custom_call.1} parent=1 // pred_fallthru
      _
    // Predicated region
    $region14: #{tpu_custom_call.1} parent=1 // pred_check
      _
    $region15: #{tpu_custom_call.1} parent=1 // pred_check_branch
      %51 = sbr.rel (0) target = $region17
    $region16: #{tpu_custom_call.1} parent=1 // pred_region
      %53 = dma.done [#allocation4], 256
    $region17: #{tpu_custom_call.1} parent=1 // pred_fallthru
      _
    %54 = vsyncpa [#allocation3], 1
    %55 = vsyncpa [#allocation4], 1

</llo_original>
